<compile_context>
chip_gen: v5e
topology: v5e:2x2
jax: 0.10.0
libtpu: 0.0.40
codegen_flags: <defaults>
</compile_context>

<pallas_src>
import functools

import jax
import jax.numpy as jnp
import numpy as np
from jax import lax
from jax.experimental import pallas as pl
from jax.experimental.pallas import tpu as pltpu


# ----------------------------- Pallas kernel ------------------------------ #
def _deconv_matmul_lrelu_kernel(w_ref, x_ref, o_ref):
    # w_ref: (R, C_out, K) bf16   x_ref: (R, K, M) bf16   o_ref: (R, C_out, M) f32
    # One invocation handles all R = s*s residues: static Python unroll -> R small
    # MXU matmuls with a fused f32 LeakyReLU(0.2) epilogue, no per-residue grid steps.
    for r in range(w_ref.shape[0]):
        acc = jnp.dot(w_ref[r], x_ref[r], preferred_element_type=jnp.float32)
        o_ref[r] = jnp.maximum(acc, 0.2 * acc)          # LeakyReLU(0.2) in f32


def _pallas_deconv_matmul_lrelu(w_pat, x_pat):
    """out[r] = leaky_relu(w_pat[r] @ x_pat[r], 0.2), all residues in ONE kernel call.

    w_pat: (R, C_out, K) bf16   x_pat: (R, K, M) bf16  ->  (R, C_out, M) f32.
    M must be a multiple of 128 so output stores are lane-dense.
    """
    r_res, c_out, _ = w_pat.shape
    m = x_pat.shape[-1]
    return pl.pallas_call(
        _deconv_matmul_lrelu_kernel,
        out_shape=jax.ShapeDtypeStruct((r_res, c_out, m), jnp.float32),
        in_specs=[
            pl.BlockSpec(memory_space=pltpu.MemorySpace.VMEM),
            pl.BlockSpec(memory_space=pltpu.MemorySpace.VMEM),
        ],
        out_specs=pl.BlockSpec(memory_space=pltpu.MemorySpace.VMEM),
    )(w_pat, x_pat)


# --------------------------- parameter setup glue -------------------------- #
def spectral_normalize_deconv_weight(w, n_iters=5, eps=1e-12):
    """Spectral norm for a ConvTranspose2d weight (C_in, C_out, kH, kW); PyTorch uses dim=1.

    Note: PyTorch persists `u` across steps with 1 power iteration per forward; here we
    run a few iterations from a fixed start once per weight update (weight-only work,
    hoisted out of the per-call path)."""
    c_in, c_out, kh, kw = w.shape
    w_mat = jnp.transpose(w, (1, 0, 2, 3)).reshape(c_out, -1)
    u = jax.random.normal(jax.random.PRNGKey(42), (c_out,), dtype=w.dtype)
    u = u / (jnp.linalg.norm(u) + eps)
    v = None
    for _ in range(n_iters):
        v = w_mat.T @ u
        v = v / (jnp.linalg.norm(v) + eps)
        u = w_mat @ v
        u = u / (jnp.linalg.norm(u) + eps)
    sigma = jnp.dot(u, w_mat @ v)
    return w / sigma


def _subpixel_taps_1d(k, s, p, d, r):
    """Kernel taps contributing to output residue r (out = q*s + r) along one dim.

    Returns [(kk, off)]: tap kk reads input index q + off for output super-pixel q."""
    taps = []
    for kk in range(k):
        num = r + p - kk * d
        if num % s == 0:
            taps.append((kk, num // s))
    return taps


def prepare_deconv_weight_patterns(weight, k, s, p, d):
    """Per-residue (C_out, K) bf16 weight matrices for the sub-pixel decomposition.

    weight: (C_in, C_out, k, k) ConvTranspose2d layout, already spectral-normalized.
    Returns (s*s, C_out, K=t1*t1*C_in) bf16.  Run once per weight update."""
    c_in, c_out, kh, kw = weight.shape
    assert kh == k and kw == k
    taps_1d = [_subpixel_taps_1d(k, s, p, d, r) for r in range(s)]
    tcounts = {len(t) for t in taps_1d}
    assert len(tcounts) == 1 and 0 not in tcounts, "need uniform, non-empty taps per residue"
    t1 = tcounts.pop()
    kdim = t1 * t1 * c_in
    w_list = []
    for ry in range(s):
        for rx in range(s):
            rows = []
            for (ky, _) in taps_1d[ry]:
                for (kx, _) in taps_1d[rx]:
                    rows.append(weight[:, :, ky, kx])            # (C_in, C_out)
            wr = jnp.stack(rows, axis=0)                         # (T, C_in, C_out)
            w_list.append(jnp.transpose(wr, (2, 0, 1)).reshape(c_out, kdim))
    return jnp.stack(w_list, axis=0).astype(jnp.bfloat16)        # (s*s, C_out, K)


# ------------------------------ forward glue ------------------------------- #
@functools.partial(jax.jit, static_argnums=(2, 3, 4, 5))
def deconv_block_forward(x, w_pat, k, s, p, d):
    """ConvTranspose2d(k, s, padding=p, dilation=d, bias=False) + LeakyReLU(0.2).

    x:     (N, C_in, H, W) NCHW f32
    w_pat: (s*s, C_out, K) bf16 from prepare_deconv_weight_patterns.
    Returns (N, C_out, H_out, W_out) NCHW f32.
    """
    n, c_in, h, w_sp = x.shape
    r_res, c_out, kdim = w_pat.shape
    h_out = (h - 1) * s - 2 * p + d * (k - 1) + 1
    w_out = (w_sp - 1) * s - 2 * p + d * (k - 1) + 1
    assert h_out % s == 0 and w_out % s == 0, "sub-pixel split needs s | H_out, W_out"
    hq, wq = h_out // s, w_out // s

    # --- static sub-pixel tap schedule (Python ints only) ---
    taps_1d = [_subpixel_taps_1d(k, s, p, d, r) for r in range(s)]
    t1 = len(taps_1d[0])
    assert all(len(t) == t1 for t in taps_1d) and t1 * t1 * c_in == kdim

    offs = [off for taps in taps_1d for (_, off) in taps]
    off_min, off_max = min(offs), max(offs)
    pad_lo = max(0, -off_min)
    pad_hi_y = max(0, (hq - 1) + off_max - (h - 1))
    pad_hi_x = max(0, (wq - 1) + off_max - (w_sp - 1))

    # bf16 once, pad once: every later gather only moves half-width data.
    xb = jnp.pad(x.astype(jnp.bfloat16),
                 ((0, 0), (0, 0), (pad_lo, pad_hi_y), (pad_lo, pad_hi_x)))

    # --- fused zero-free patch gather ---
    # One stack of the few distinct shifted windows, then a single static gather that
    # selects each residue's t1*t1 taps.  No zero taps are ever materialized.
    # TODO(synk): a fully in-kernel gather (ANY-space ref + manual window DMA) would
    # need in-kernel lane relayouts; at this size the jitted XLA gather fuses cleanly.
    dys = sorted({off + pad_lo for taps in taps_1d for (_, off) in taps})
    win = jnp.stack(
        [xb[:, :, dy:dy + hq, dx:dx + wq] for dy in dys for dx in dys],
        axis=0).reshape(len(dys), len(dys), n, c_in, hq, wq)
    pos = {dy: i for i, dy in enumerate(dys)}
    idx = np.array([[pos[off + pad_lo] for (_, off) in taps_1d[r]] for r in range(s)])
    x_all = win[idx][:, :, idx]                          # (s, t1, s, t1, N, C_in, Hq, Wq)
    x_all = jnp.transpose(x_all, (0, 2, 1, 3, 5, 4, 6, 7))  # (ry, rx, ty, tx, C_in, N, Hq, Wq)

    m_real = n * hq * wq
    m_pad = ((m_real + 127) // 128) * 128                # lane-dense M
    x_pat = x_all.reshape(r_res, kdim, m_real)           # (s*s, K, M) bf16
    if m_pad != m_real:
        x_pat = jnp.pad(x_pat, ((0, 0), (0, 0), (0, m_pad - m_real)))

    # --- Pallas: all residues in one (C_out, K) @ (K, M) + fused LeakyReLU call ---
    out_pat = _pallas_deconv_matmul_lrelu(w_pat, x_pat)  # (s*s, C_out, M) f32
    if m_pad != m_real:
        out_pat = out_pat[..., :m_real]

    # --- pixel-shuffle the s*s residue grids back into NCHW (one small permute) ---
    out6 = out_pat.reshape(s, s, c_out, n, hq, wq)       # (ry, rx, co, n, qy, qx)
    out = jnp.transpose(out6, (3, 2, 4, 0, 5, 1))        # (n, co, qy, ry, qx, rx)
    return out.reshape(n, c_out, h_out, w_out)


# -------------------------------- reference -------------------------------- #
def deconv_block_reference(x, weight, k, s, p, d):
    """Pure-JAX reference: lax conv with lhs_dilation == ConvTranspose2d (f32, HIGHEST)."""
    w_flip = weight[:, :, ::-1, ::-1]
    w_conv = jnp.transpose(w_flip, (1, 0, 2, 3))         # OIHW
    pad = d * (k - 1) - p
    y = lax.conv_general_dilated(
        x, w_conv,
        window_strides=(1, 1),
        padding=[(pad, pad), (pad, pad)],
        lhs_dilation=(s, s),
        rhs_dilation=(d, d),
        dimension_numbers=("NCHW", "OIHW", "NCHW"),
        precision=lax.Precision.HIGHEST,
    )
    return jnp.where(y >= 0.0, y, 0.2 * y)


# ----------------------------------- main ----------------------------------- #
if __name__ == "__main__":
    # DeConvBlock(in_dim=4, out_dim=8, k=4, s=2, p=1): the typical 2x upsampling deconv.
    in_dim, out_dim, k, s, p, d = 4, 8, 4, 2, 1, 1
    N, H, W = 2, 16, 16

    key = jax.random.PRNGKey(0)
    kx, kw_ = jax.random.split(key)
    x = jax.random.normal(kx, (N, in_dim, H, W), dtype=jnp.float32)

    # ConvTranspose2d weight (in_dim, out_dim, k, k); deterministic init, then spectral norm.
    w_orig = 0.1 * jax.random.normal(kw_, (in_dim, out_dim, k, k), dtype=jnp.float32)
    w_sn = spectral_normalize_deconv_weight(w_orig)

    # Weight-only prep (spectral norm above + per-residue weight mats): once per update.
    w_pat = jax.block_until_ready(prepare_deconv_weight_patterns(w_sn, k, s, p, d))

    out = jax.block_until_ready(deconv_block_forward(x, w_pat, k, s, p, d))
    ref = jax.block_until_ready(deconv_block_reference(x, w_sn, k, s, p, d))

    h_out = (H - 1) * s - 2 * p + d * (k - 1) + 1
    w_out = (W - 1) * s - 2 * p + d * (k - 1) + 1
    assert out.shape == (N, out_dim, h_out, w_out), out.shape
    # Kernel uses bf16 MXU operands with f32 accumulation; tolerance is sized for bf16
    # rounding over a K=16 contraction (a real tap/offset bug would be 10-50x larger).
    err = np.max(np.abs(np.asarray(out) - np.asarray(ref)))
    assert np.allclose(np.asarray(out), np.asarray(ref), rtol=3e-2, atol=3e-2), err

    print("KERNEL_OK")
</pallas_src>

<mosaic_0001>
module attributes {stable_mosaic.version = 11 : i64} {
  func.func @_deconv_matmul_lrelu_kernel(%arg0: memref<4x8x16xbf16, #tpu.memory_space<vmem>>, %arg1: memref<4x16x512xbf16, #tpu.memory_space<vmem>>, %arg2: memref<4x8x512xf32, #tpu.memory_space<vmem>>) attributes {dimension_semantics = [], scalar_prefetch = 0 : i64, scratch_operands = 0 : i64, tpu.core_type = #tpu.core_type<tc>} {
    %c0 = arith.constant 0 : index
    %c0_0 = arith.constant 0 : index
    %c0_1 = arith.constant 0 : index
    %0 = vector.load %arg0[%c0, %c0_0, %c0_1] : memref<4x8x16xbf16, #tpu.memory_space<vmem>>, vector<1x8x16xbf16>
    %1 = vector.shape_cast %0 : vector<1x8x16xbf16> to vector<8x16xbf16>
    %c0_2 = arith.constant 0 : index
    %c0_3 = arith.constant 0 : index
    %c0_4 = arith.constant 0 : index
    %2 = vector.load %arg1[%c0_2, %c0_3, %c0_4] : memref<4x16x512xbf16, #tpu.memory_space<vmem>>, vector<1x16x512xbf16>
    %3 = vector.shape_cast %2 : vector<1x16x512xbf16> to vector<16x512xbf16>
    %cst = arith.constant dense<0.000000e+00> : vector<8x512xf32>
    %4 = tpu.matmul %1, %3, %cst {dimension_numbers = #tpu.dot_dimension_numbers<[1], [0], [0], [1], [0, 0, 1, 1], [], []>} : vector<8x16xbf16>, vector<16x512xbf16>, vector<8x512xf32> -> vector<8x512xf32>
    %cst_5 = arith.constant 2.000000e-01 : f32
    %5 = vector.broadcast %cst_5 : f32 to vector<8x512xf32>
    %6 = arith.mulf %5, %4 : vector<8x512xf32>
    %7 = arith.maximumf %4, %6 : vector<8x512xf32>
    %c0_6 = arith.constant 0 : index
    %c0_7 = arith.constant 0 : index
    %c0_8 = arith.constant 0 : index
    %8 = vector.load %arg2[%c0_6, %c0_7, %c0_8] : memref<4x8x512xf32, #tpu.memory_space<vmem>>, vector<1x8x512xf32>
    %9 = vector.shape_cast %8 : vector<1x8x512xf32> to vector<8x512xf32>
    %10 = vector.shape_cast %7 : vector<8x512xf32> to vector<1x8x512xf32>
    tpu.vector_store %arg2[%c0_6, %c0_7, %c0_8], %10 {strides = array<i32>} : memref<4x8x512xf32, #tpu.memory_space<vmem>>, vector<1x8x512xf32>,
    %c1 = arith.constant 1 : index
    %c0_9 = arith.constant 0 : index
    %c0_10 = arith.constant 0 : index
    %11 = vector.load %arg0[%c1, %c0_9, %c0_10] : memref<4x8x16xbf16, #tpu.memory_space<vmem>>, vector<1x8x16xbf16>
    %12 = vector.shape_cast %11 : vector<1x8x16xbf16> to vector<8x16xbf16>
    %c1_11 = arith.constant 1 : index
    %c0_12 = arith.constant 0 : index
    %c0_13 = arith.constant 0 : index
    %13 = vector.load %arg1[%c1_11, %c0_12, %c0_13] : memref<4x16x512xbf16, #tpu.memory_space<vmem>>, vector<1x16x512xbf16>
    %14 = vector.shape_cast %13 : vector<1x16x512xbf16> to vector<16x512xbf16>
    %cst_14 = arith.constant dense<0.000000e+00> : vector<8x512xf32>
    %15 = tpu.matmul %12, %14, %cst_14 {dimension_numbers = #tpu.dot_dimension_numbers<[1], [0], [0], [1], [0, 0, 1, 1], [], []>} : vector<8x16xbf16>, vector<16x512xbf16>, vector<8x512xf32> -> vector<8x512xf32>
    %cst_15 = arith.constant 2.000000e-01 : f32
    %16 = vector.broadcast %cst_15 : f32 to vector<8x512xf32>
    %17 = arith.mulf %16, %15 : vector<8x512xf32>
    %18 = arith.maximumf %15, %17 : vector<8x512xf32>
    %c1_16 = arith.constant 1 : index
    %c0_17 = arith.constant 0 : index
    %c0_18 = arith.constant 0 : index
    %19 = vector.load %arg2[%c1_16, %c0_17, %c0_18] : memref<4x8x512xf32, #tpu.memory_space<vmem>>, vector<1x8x512xf32>
    %20 = vector.shape_cast %19 : vector<1x8x512xf32> to vector<8x512xf32>
    %21 = vector.shape_cast %18 : vector<8x512xf32> to vector<1x8x512xf32>
    tpu.vector_store %arg2[%c1_16, %c0_17, %c0_18], %21 {strides = array<i32>} : memref<4x8x512xf32, #tpu.memory_space<vmem>>, vector<1x8x512xf32>,
    %c2 = arith.constant 2 : index
    %c0_19 = arith.constant 0 : index
    %c0_20 = arith.constant 0 : index
    %22 = vector.load %arg0[%c2, %c0_19, %c0_20] : memref<4x8x16xbf16, #tpu.memory_space<vmem>>, vector<1x8x16xbf16>
    %23 = vector.shape_cast %22 : vector<1x8x16xbf16> to vector<8x16xbf16>
    %c2_21 = arith.constant 2 : index
    %c0_22 = arith.constant 0 : index
    %c0_23 = arith.constant 0 : index
    %24 = vector.load %arg1[%c2_21, %c0_22, %c0_23] : memref<4x16x512xbf16, #tpu.memory_space<vmem>>, vector<1x16x512xbf16>
    %25 = vector.shape_cast %24 : vector<1x16x512xbf16> to vector<16x512xbf16>
    %cst_24 = arith.constant dense<0.000000e+00> : vector<8x512xf32>
    %26 = tpu.matmul %23, %25, %cst_24 {dimension_numbers = #tpu.dot_dimension_numbers<[1], [0], [0], [1], [0, 0, 1, 1], [], []>} : vector<8x16xbf16>, vector<16x512xbf16>, vector<8x512xf32> -> vector<8x512xf32>
    %cst_25 = arith.constant 2.000000e-01 : f32
    %27 = vector.broadcast %cst_25 : f32 to vector<8x512xf32>
    %28 = arith.mulf %27, %26 : vector<8x512xf32>
    %29 = arith.maximumf %26, %28 : vector<8x512xf32>
    %c2_26 = arith.constant 2 : index
    %c0_27 = arith.constant 0 : index
    %c0_28 = arith.constant 0 : index
    %30 = vector.load %arg2[%c2_26, %c0_27, %c0_28] : memref<4x8x512xf32, #tpu.memory_space<vmem>>, vector<1x8x512xf32>
    %31 = vector.shape_cast %30 : vector<1x8x512xf32> to vector<8x512xf32>
    %32 = vector.shape_cast %29 : vector<8x512xf32> to vector<1x8x512xf32>
    tpu.vector_store %arg2[%c2_26, %c0_27, %c0_28], %32 {strides = array<i32>} : memref<4x8x512xf32, #tpu.memory_space<vmem>>, vector<1x8x512xf32>,
    %c3 = arith.constant 3 : index
    %c0_29 = arith.constant 0 : index
    %c0_30 = arith.constant 0 : index
    %33 = vector.load %arg0[%c3, %c0_29, %c0_30] : memref<4x8x16xbf16, #tpu.memory_space<vmem>>, vector<1x8x16xbf16>
    %34 = vector.shape_cast %33 : vector<1x8x16xbf16> to vector<8x16xbf16>
    %c3_31 = arith.constant 3 : index
    %c0_32 = arith.constant 0 : index
    %c0_33 = arith.constant 0 : index
    %35 = vector.load %arg1[%c3_31, %c0_32, %c0_33] : memref<4x16x512xbf16, #tpu.memory_space<vmem>>, vector<1x16x512xbf16>
    %36 = vector.shape_cast %35 : vector<1x16x512xbf16> to vector<16x512xbf16>
    %cst_34 = arith.constant dense<0.000000e+00> : vector<8x512xf32>
    %37 = tpu.matmul %34, %36, %cst_34 {dimension_numbers = #tpu.dot_dimension_numbers<[1], [0], [0], [1], [0, 0, 1, 1], [], []>} : vector<8x16xbf16>, vector<16x512xbf16>, vector<8x512xf32> -> vector<8x512xf32>
    %cst_35 = arith.constant 2.000000e-01 : f32
    %38 = vector.broadcast %cst_35 : f32 to vector<8x512xf32>
    %39 = arith.mulf %38, %37 : vector<8x512xf32>
    %40 = arith.maximumf %37, %39 : vector<8x512xf32>
    %c3_36 = arith.constant 3 : index
    %c0_37 = arith.constant 0 : index
    %c0_38 = arith.constant 0 : index
    %41 = vector.load %arg2[%c3_36, %c0_37, %c0_38] : memref<4x8x512xf32, #tpu.memory_space<vmem>>, vector<1x8x512xf32>
    %42 = vector.shape_cast %41 : vector<1x8x512xf32> to vector<8x512xf32>
    %43 = vector.shape_cast %40 : vector<8x512xf32> to vector<1x8x512xf32>
    tpu.vector_store %arg2[%c3_36, %c0_37, %c0_38], %43 {strides = array<i32>} : memref<4x8x512xf32, #tpu.memory_space<vmem>>, vector<1x8x512xf32>,
    return
  }
}

</mosaic_0001>

<llo_original>
// kernel: deconv_block_forward.1
$region0: #{deconv_block_forward.1}
  #allocation0 [shape = 'u32[]', space=smem, size = 0x4, offset = 0x4, fixed_abs, tag = 'smem constant byte address 0x4 - core index']
  #allocation1 [shape = 'u32[72,128]{1,0:T(1,128)}', space=vmem, size = 0x9000, scoped, tag = 'internal scratch']
  %s0 = inlined_call_operand.vmem [shape: bf16[4,8,16], index: 0, kind: input, shape index: {}]
  %s1 = inlined_call_operand.vmem [shape: bf16[4,16,512], index: 1, kind: input, shape index: {}]
  %s2 = inlined_call_operand.vmem [shape: f32[4,8,512], index: 2, kind: output, shape index: {}]
  %s3 = sld [smem:[#allocation0]]
  $region18: #{deconv_block_forward.1} parent=0
    _
  %s5 = ssub.s32 1, %s3
  %s6 = scalar_select 0, %s5, %s3
  // Predicated region
  $region2: #{deconv_block_forward.1} parent=0 // pred_check
    _
  $region3: #{deconv_block_forward.1} parent=0 // pred_check_branch
    %8 = sbr.rel (0) target = $region5
  $region4: #{deconv_block_forward.1} parent=0 // pred_region
    _
  $region5: #{deconv_block_forward.1} parent=0 // pred_fallthru
    _
  // Predicated region
  $region6: #{deconv_block_forward.1} parent=0 // pred_check
    _
  $region7: #{deconv_block_forward.1} parent=0 // pred_check_branch
    %10 = sbr.rel (0) target = $region9
  $region8: #{deconv_block_forward.1} parent=0 // pred_region
    _
  $region9: #{deconv_block_forward.1} parent=0 // pred_fallthru
    _
  %v12 = vld [vmem:[%s0] sm:$0xf]
  %v13 = vld [vmem:[%s1] sm:$0xff]
  %v14 = vld [vmem:[%s1 + $0x8] sm:$0xff]
  %v15 = vld [vmem:[%s1 + $0x10] sm:$0xff]
  %v16 = vld [vmem:[%s1 + $0x18] sm:$0xff]
  %v21 = vunpack.c.l.b16 %v13
  %v22 = vunpack.c.h.b16 %v13
  %v23 = vunpack.c.l.b16 %v14
  %v24 = vunpack.c.h.b16 %v14
  %v25 = vunpack.c.l.b16 %v15
  %v26 = vunpack.c.h.b16 %v15
  %v27 = vunpack.c.l.b16 %v16
  %v28 = vunpack.c.h.b16 %v16
  %v29 = vpack.c.b16 %v25, %v21
  %v30 = vpack.c.b16 %v26, %v22
  %v31 = vpack.c.b16 %v27, %v23
  %v32 = vpack.c.b16 %v28, %v24
  %vm37 = vcmask 130048
  %v39 = vsel %vm37, %v12, 0
  %41 = vmatpush.bf16.msra.mxu0 0
  %42 = vmatpush.bf16.msra.mxu0 0
  %43 = vmatpush.bf16.msra.mxu0 0
  %44 = vmatpush.bf16.msra.mxu0 0
  %45 = vmatpush.bf16.msra.mxu0 0
  %46 = vmatpush.bf16.msra.mxu0 0
  %47 = vmatpush.bf16.msra.mxu0 0
  %48 = vmatpush.bf16.msra.mxu0 %v29
  %49 = vmatmul.bf16.gmra.mxu0 %v39
  %v50 = vpop.f32.mrf.mxu0
  %v51 = vadd.f32 0.0, %v50
  %v52 = vpop.f32.mrf.mxu0
  %53 = vdwg.mxu0
  %54 = vmatpush.bf16.msra.mxu0 0
  %55 = vmatpush.bf16.msra.mxu0 0
  %56 = vmatpush.bf16.msra.mxu0 0
  %57 = vmatpush.bf16.msra.mxu0 0
  %58 = vmatpush.bf16.msra.mxu0 0
  %59 = vmatpush.bf16.msra.mxu0 0
  %60 = vmatpush.bf16.msra.mxu0 0
  %61 = vmatpush.bf16.msra.mxu0 %v30
  %62 = vmatmul.bf16.gmra.mxu0 %v39
  %v63 = vpop.f32.mrf.mxu0
  %v64 = vadd.f32 0.0, %v63
  %v65 = vpop.f32.mrf.mxu0
  %66 = vdwg.mxu0
  %67 = vmatpush.bf16.msra.mxu0 0
  %68 = vmatpush.bf16.msra.mxu0 0
  %69 = vmatpush.bf16.msra.mxu0 0
  %70 = vmatpush.bf16.msra.mxu0 0
  %71 = vmatpush.bf16.msra.mxu0 0
  %72 = vmatpush.bf16.msra.mxu0 0
  %73 = vmatpush.bf16.msra.mxu0 0
  %74 = vmatpush.bf16.msra.mxu0 %v31
  %75 = vmatmul.bf16.gmra.mxu0 %v39
  %v76 = vpop.f32.mrf.mxu0
  %v77 = vadd.f32 0.0, %v76
  %v78 = vpop.f32.mrf.mxu0
  %79 = vdwg.mxu0
  %80 = vmatpush.bf16.msra.mxu0 0
  %81 = vmatpush.bf16.msra.mxu0 0
  %82 = vmatpush.bf16.msra.mxu0 0
  %83 = vmatpush.bf16.msra.mxu0 0
  %84 = vmatpush.bf16.msra.mxu0 0
  %85 = vmatpush.bf16.msra.mxu0 0
  %86 = vmatpush.bf16.msra.mxu0 0
  %87 = vmatpush.bf16.msra.mxu0 %v32
  %88 = vmatmul.bf16.gmra.mxu0 %v39
  %v89 = vpop.f32.mrf.mxu0
  %v90 = vadd.f32 0.0, %v89
  %v91 = vpop.f32.mrf.mxu0
  %92 = vdwg.mxu0
  %v93 = vmul.f32 %v51, 0.2
  %v94 = vmul.f32 %v64, 0.2
  %v95 = vmul.f32 %v77, 0.2
  %v96 = vmul.f32 %v90, 0.2
  %v97 = vmax.f32 %v51, %v93
  %v98 = vmax.f32 %v64, %v94
  %v99 = vmax.f32 %v77, %v95
  %v100 = vmax.f32 %v90, %v96
  %101 = vst [vmem:[%s2] sm:$0xff] %v97
  %102 = vst [vmem:[%s2 + $0x8] sm:$0xff] %v98
  %103 = vst [vmem:[%s2 + $0x10] sm:$0xff] %v99
  %104 = vst [vmem:[%s2 + $0x18] sm:$0xff] %v100
  %s105 = scalar_lea.vmem %s0, 4
  %v106 = vld [vmem:[%s105] sm:$0xf]
  %s107 = scalar_lea.vmem %s1, 32
  %v108 = vld [vmem:[%s107] sm:$0xff]
  %v109 = vld [vmem:[%s107 + $0x8] sm:$0xff]
  %v110 = vld [vmem:[%s107 + $0x10] sm:$0xff]
  %v111 = vld [vmem:[%s107 + $0x18] sm:$0xff]
  %v116 = vunpack.c.l.b16 %v108
  %v117 = vunpack.c.h.b16 %v108
  %v118 = vunpack.c.l.b16 %v109
  %v119 = vunpack.c.h.b16 %v109
  %v120 = vunpack.c.l.b16 %v110
  %v121 = vunpack.c.h.b16 %v110
  %v122 = vunpack.c.l.b16 %v111
  %v123 = vunpack.c.h.b16 %v111
  %v124 = vpack.c.b16 %v120, %v116
  %v125 = vpack.c.b16 %v121, %v117
  %v126 = vpack.c.b16 %v122, %v118
  %v127 = vpack.c.b16 %v123, %v119
  %v133 = vsel %vm37, %v106, 0
  %135 = vmatpush.bf16.msra.mxu0 0
  %136 = vmatpush.bf16.msra.mxu0 0
  %137 = vmatpush.bf16.msra.mxu0 0
  %138 = vmatpush.bf16.msra.mxu0 0
  %139 = vmatpush.bf16.msra.mxu0 0
  %140 = vmatpush.bf16.msra.mxu0 0
  %141 = vmatpush.bf16.msra.mxu0 0
  %142 = vmatpush.bf16.msra.mxu0 %v124
  %143 = vmatmul.bf16.gmra.mxu0 %v133
  %v144 = vpop.f32.mrf.mxu0
  %v145 = vadd.f32 0.0, %v144
  %v146 = vpop.f32.mrf.mxu0
  %147 = vdwg.mxu0
  %148 = vmatpush.bf16.msra.mxu0 0
  %149 = vmatpush.bf16.msra.mxu0 0
  %150 = vmatpush.bf16.msra.mxu0 0
  %151 = vmatpush.bf16.msra.mxu0 0
  %152 = vmatpush.bf16.msra.mxu0 0
  %153 = vmatpush.bf16.msra.mxu0 0
  %154 = vmatpush.bf16.msra.mxu0 0
  %155 = vmatpush.bf16.msra.mxu0 %v125
  %156 = vmatmul.bf16.gmra.mxu0 %v133
  %v157 = vpop.f32.mrf.mxu0
  %v158 = vadd.f32 0.0, %v157
  %v159 = vpop.f32.mrf.mxu0
  %160 = vdwg.mxu0
  %161 = vmatpush.bf16.msra.mxu0 0
  %162 = vmatpush.bf16.msra.mxu0 0
  %163 = vmatpush.bf16.msra.mxu0 0
  %164 = vmatpush.bf16.msra.mxu0 0
  %165 = vmatpush.bf16.msra.mxu0 0
  %166 = vmatpush.bf16.msra.mxu0 0
  %167 = vmatpush.bf16.msra.mxu0 0
  %168 = vmatpush.bf16.msra.mxu0 %v126
  %169 = vmatmul.bf16.gmra.mxu0 %v133
  %v170 = vpop.f32.mrf.mxu0
  %v171 = vadd.f32 0.0, %v170
  %v172 = vpop.f32.mrf.mxu0
  %173 = vdwg.mxu0
  %174 = vmatpush.bf16.msra.mxu0 0
  %175 = vmatpush.bf16.msra.mxu0 0
  %176 = vmatpush.bf16.msra.mxu0 0
  %177 = vmatpush.bf16.msra.mxu0 0
  %178 = vmatpush.bf16.msra.mxu0 0
  %179 = vmatpush.bf16.msra.mxu0 0
  %180 = vmatpush.bf16.msra.mxu0 0
  %181 = vmatpush.bf16.msra.mxu0 %v127
  %182 = vmatmul.bf16.gmra.mxu0 %v133
  %v183 = vpop.f32.mrf.mxu0
  %v184 = vadd.f32 0.0, %v183
  %v185 = vpop.f32.mrf.mxu0
  %186 = vdwg.mxu0
  %v187 = vmul.f32 %v145, 0.2
  %v188 = vmul.f32 %v158, 0.2
  %v189 = vmul.f32 %v171, 0.2
  %v190 = vmul.f32 %v184, 0.2
  %v191 = vmax.f32 %v145, %v187
  %v192 = vmax.f32 %v158, %v188
  %v193 = vmax.f32 %v171, %v189
  %v194 = vmax.f32 %v184, %v190
  %s195 = scalar_lea.vmem %s2, 32
  %196 = vst [vmem:[%s195] sm:$0xff] %v191
  %197 = vst [vmem:[%s195 + $0x8] sm:$0xff] %v192
  %198 = vst [vmem:[%s195 + $0x10] sm:$0xff] %v193
  %199 = vst [vmem:[%s195 + $0x18] sm:$0xff] %v194
  %s200 = scalar_lea.vmem %s0, 8
  %v201 = vld [vmem:[%s200] sm:$0xf]
  %s202 = scalar_lea.vmem %s1, 64
  %v203 = vld [vmem:[%s202] sm:$0xff]
  %v204 = vld [vmem:[%s202 + $0x8] sm:$0xff]
  %v205 = vld [vmem:[%s202 + $0x10] sm:$0xff]
  %v206 = vld [vmem:[%s202 + $0x18] sm:$0xff]
  %v211 = vunpack.c.l.b16 %v203
  %v212 = vunpack.c.h.b16 %v203
  %v213 = vunpack.c.l.b16 %v204
  %v214 = vunpack.c.h.b16 %v204
  %v215 = vunpack.c.l.b16 %v205
  %v216 = vunpack.c.h.b16 %v205
  %v217 = vunpack.c.l.b16 %v206
  %v218 = vunpack.c.h.b16 %v206
  %v219 = vpack.c.b16 %v215, %v211
  %v220 = vpack.c.b16 %v216, %v212
  %v221 = vpack.c.b16 %v217, %v213
  %v222 = vpack.c.b16 %v218, %v214
  %v228 = vsel %vm37, %v201, 0
  %230 = vmatpush.bf16.msra.mxu0 0
  %231 = vmatpush.bf16.msra.mxu0 0
  %232 = vmatpush.bf16.msra.mxu0 0
  %233 = vmatpush.bf16.msra.mxu0 0
  %234 = vmatpush.bf16.msra.mxu0 0
  %235 = vmatpush.bf16.msra.mxu0 0
  %236 = vmatpush.bf16.msra.mxu0 0
  %237 = vmatpush.bf16.msra.mxu0 %v219
  %238 = vmatmul.bf16.gmra.mxu0 %v228
  %v239 = vpop.f32.mrf.mxu0
  %v240 = vadd.f32 0.0, %v239
  %v241 = vpop.f32.mrf.mxu0
  %242 = vdwg.mxu0
  %243 = vmatpush.bf16.msra.mxu0 0
  %244 = vmatpush.bf16.msra.mxu0 0
  %245 = vmatpush.bf16.msra.mxu0 0
  %246 = vmatpush.bf16.msra.mxu0 0
  %247 = vmatpush.bf16.msra.mxu0 0
  %248 = vmatpush.bf16.msra.mxu0 0
  %249 = vmatpush.bf16.msra.mxu0 0
  %250 = vmatpush.bf16.msra.mxu0 %v220
  %251 = vmatmul.bf16.gmra.mxu0 %v228
  %v252 = vpop.f32.mrf.mxu0
  %v253 = vadd.f32 0.0, %v252
  %v254 = vpop.f32.mrf.mxu0
  %255 = vdwg.mxu0
  %256 = vmatpush.bf16.msra.mxu0 0
  %257 = vmatpush.bf16.msra.mxu0 0
  %258 = vmatpush.bf16.msra.mxu0 0
  %259 = vmatpush.bf16.msra.mxu0 0
  %260 = vmatpush.bf16.msra.mxu0 0
  %261 = vmatpush.bf16.msra.mxu0 0
  %262 = vmatpush.bf16.msra.mxu0 0
  %263 = vmatpush.bf16.msra.mxu0 %v221
  %264 = vmatmul.bf16.gmra.mxu0 %v228
  %v265 = vpop.f32.mrf.mxu0
  %v266 = vadd.f32 0.0, %v265
  %v267 = vpop.f32.mrf.mxu0
  %268 = vdwg.mxu0
  %269 = vmatpush.bf16.msra.mxu0 0
  %270 = vmatpush.bf16.msra.mxu0 0
  %271 = vmatpush.bf16.msra.mxu0 0
  %272 = vmatpush.bf16.msra.mxu0 0
  %273 = vmatpush.bf16.msra.mxu0 0
  %274 = vmatpush.bf16.msra.mxu0 0
  %275 = vmatpush.bf16.msra.mxu0 0
  %276 = vmatpush.bf16.msra.mxu0 %v222
  %277 = vmatmul.bf16.gmra.mxu0 %v228
  %v278 = vpop.f32.mrf.mxu0
  %v279 = vadd.f32 0.0, %v278
  %v280 = vpop.f32.mrf.mxu0
  %281 = vdwg.mxu0
  %v282 = vmul.f32 %v240, 0.2
  %v283 = vmul.f32 %v253, 0.2
  %v284 = vmul.f32 %v266, 0.2
  %v285 = vmul.f32 %v279, 0.2
  %v286 = vmax.f32 %v240, %v282
  %v287 = vmax.f32 %v253, %v283
  %v288 = vmax.f32 %v266, %v284
  %v289 = vmax.f32 %v279, %v285
  %s290 = scalar_lea.vmem %s2, 64
  %291 = vst [vmem:[%s290] sm:$0xff] %v286
  %292 = vst [vmem:[%s290 + $0x8] sm:$0xff] %v287
  %293 = vst [vmem:[%s290 + $0x10] sm:$0xff] %v288
  %294 = vst [vmem:[%s290 + $0x18] sm:$0xff] %v289
  %s295 = scalar_lea.vmem %s0, 12
  %v296 = vld [vmem:[%s295] sm:$0xf]
  %s297 = scalar_lea.vmem %s1, 96
  %v298 = vld [vmem:[%s297] sm:$0xff]
  %v299 = vld [vmem:[%s297 + $0x8] sm:$0xff]
  %v300 = vld [vmem:[%s297 + $0x10] sm:$0xff]
  %v301 = vld [vmem:[%s297 + $0x18] sm:$0xff]
  %v306 = vunpack.c.l.b16 %v298
  %v307 = vunpack.c.h.b16 %v298
  %v308 = vunpack.c.l.b16 %v299
  %v309 = vunpack.c.h.b16 %v299
  %v310 = vunpack.c.l.b16 %v300
  %v311 = vunpack.c.h.b16 %v300
  %v312 = vunpack.c.l.b16 %v301
  %v313 = vunpack.c.h.b16 %v301
  %v314 = vpack.c.b16 %v310, %v306
  %v315 = vpack.c.b16 %v311, %v307
  %v316 = vpack.c.b16 %v312, %v308
  %v317 = vpack.c.b16 %v313, %v309
  %v323 = vsel %vm37, %v296, 0
  %325 = vmatpush.bf16.msra.mxu0 0
  %326 = vmatpush.bf16.msra.mxu0 0
  %327 = vmatpush.bf16.msra.mxu0 0
  %328 = vmatpush.bf16.msra.mxu0 0
  %329 = vmatpush.bf16.msra.mxu0 0
  %330 = vmatpush.bf16.msra.mxu0 0
  %331 = vmatpush.bf16.msra.mxu0 0
  %332 = vmatpush.bf16.msra.mxu0 %v314
  %333 = vmatmul.bf16.gmra.mxu0 %v323
  %v334 = vpop.f32.mrf.mxu0
  %v335 = vadd.f32 0.0, %v334
  %v336 = vpop.f32.mrf.mxu0
  %337 = vdwg.mxu0
  %338 = vmatpush.bf16.msra.mxu0 0
  %339 = vmatpush.bf16.msra.mxu0 0
  %340 = vmatpush.bf16.msra.mxu0 0
  %341 = vmatpush.bf16.msra.mxu0 0
  %342 = vmatpush.bf16.msra.mxu0 0
  %343 = vmatpush.bf16.msra.mxu0 0
  %344 = vmatpush.bf16.msra.mxu0 0
  %345 = vmatpush.bf16.msra.mxu0 %v315
  %346 = vmatmul.bf16.gmra.mxu0 %v323
  %v347 = vpop.f32.mrf.mxu0
  %v348 = vadd.f32 0.0, %v347
  %v349 = vpop.f32.mrf.mxu0
  %350 = vdwg.mxu0
  %351 = vmatpush.bf16.msra.mxu0 0
  %352 = vmatpush.bf16.msra.mxu0 0
  %353 = vmatpush.bf16.msra.mxu0 0
  %354 = vmatpush.bf16.msra.mxu0 0
  %355 = vmatpush.bf16.msra.mxu0 0
  %356 = vmatpush.bf16.msra.mxu0 0
  %357 = vmatpush.bf16.msra.mxu0 0
  %358 = vmatpush.bf16.msra.mxu0 %v316
  %359 = vmatmul.bf16.gmra.mxu0 %v323
  %v360 = vpop.f32.mrf.mxu0
  %v361 = vadd.f32 0.0, %v360
  %v362 = vpop.f32.mrf.mxu0
  %363 = vdwg.mxu0
  %364 = vmatpush.bf16.msra.mxu0 0
  %365 = vmatpush.bf16.msra.mxu0 0
  %366 = vmatpush.bf16.msra.mxu0 0
  %367 = vmatpush.bf16.msra.mxu0 0
  %368 = vmatpush.bf16.msra.mxu0 0
  %369 = vmatpush.bf16.msra.mxu0 0
  %370 = vmatpush.bf16.msra.mxu0 0
  %371 = vmatpush.bf16.msra.mxu0 %v317
  %372 = vmatmul.bf16.gmra.mxu0 %v323
  %v373 = vpop.f32.mrf.mxu0
  %v374 = vadd.f32 0.0, %v373
  %v375 = vpop.f32.mrf.mxu0
  %376 = vdwg.mxu0
  %v377 = vmul.f32 %v335, 0.2
  %v378 = vmul.f32 %v348, 0.2
  %v379 = vmul.f32 %v361, 0.2
  %v380 = vmul.f32 %v374, 0.2
  %v381 = vmax.f32 %v335, %v377
  %v382 = vmax.f32 %v348, %v378
  %v383 = vmax.f32 %v361, %v379
  %v384 = vmax.f32 %v374, %v380
  %s385 = scalar_lea.vmem %s2, 96
  %386 = vst [vmem:[%s385] sm:$0xff] %v381
  %387 = vst [vmem:[%s385 + $0x8] sm:$0xff] %v382
  %388 = vst [vmem:[%s385 + $0x10] sm:$0xff] %v383
  %389 = vst [vmem:[%s385 + $0x18] sm:$0xff] %v384
  // Predicated region
  $region10: #{deconv_block_forward.1} parent=0 // pred_check
    _
  $region11: #{deconv_block_forward.1} parent=0 // pred_check_branch
    %391 = sbr.rel (0) target = $region13
  $region12: #{deconv_block_forward.1} parent=0 // pred_region
    _
  $region13: #{deconv_block_forward.1} parent=0 // pred_fallthru
    _
  // Predicated region
  $region14: #{deconv_block_forward.1} parent=0 // pred_check
    _
  $region15: #{deconv_block_forward.1} parent=0 // pred_check_branch
    %393 = sbr.rel (0) target = $region17
  $region16: #{deconv_block_forward.1} parent=0 // pred_region
    _
  $region17: #{deconv_block_forward.1} parent=0 // pred_fallthru
    _

</llo_original>
